<compile_context>
chip_gen: v7x
topology: tpu7x:2x2x1
jax: 0.10.0
libtpu: 0.0.40
codegen_flags: <defaults>
</compile_context>

<pallas_src>
import jax
import jax.numpy as jnp
from jax.experimental import pallas as pl
from jax.experimental.pallas import tpu as pltpu

NUM_QUEUES = 4                      # Q and Y each have NUM_QUEUES entries
STATE_DIM = 2 * NUM_QUEUES          # concatenated state length (== 8, sublane aligned)
NUM_ACTIONS = NUM_QUEUES + 1        # idle + one action per queue
A_PAD = 128                         # lane-dense padded action dim


# ----------------------------------------------------------------------------
# Kernels
# ----------------------------------------------------------------------------
def _policy_single_kernel(state_col_ref, w_ref, logits_ref):
    """Single decision: VPU broadcast-multiply + XLU sublane reduce (no MXU)."""
    prod = w_ref[...] * state_col_ref[...]              # (S, A_PAD) * (S, 1) -> (S, A_PAD)
    logits = jnp.sum(prod, axis=0, keepdims=True)       # (1, A_PAD)
    col = jax.lax.broadcasted_iota(jnp.int32, logits.shape, dimension=1)
    logits_ref[...] = jnp.where(col < NUM_ACTIONS, logits, -jnp.inf)


def _policy_batch_kernel(states_ref, w_ref, logits_ref):
    """Batched decisions: one MXU matmul per (TB, S) x (S, A_PAD) tile."""
    logits = jnp.dot(states_ref[...], w_ref[...], preferred_element_type=jnp.float32)
    col = jax.lax.broadcasted_iota(jnp.int32, logits.shape, dimension=1)
    logits_ref[...] = jnp.where(col < NUM_ACTIONS, logits, -jnp.inf)


# ----------------------------------------------------------------------------
# Wrappers
# ----------------------------------------------------------------------------
def mdp_policy(Q, Y, W):
    """Forward semantics of MDP_module: one state = concat([Q, Y]) -> action."""
    # glue: concatenation in plain JAX; passed as an (S, 1) column (no padding needed)
    state_col = jnp.concatenate([Q, Y]).astype(jnp.float32).reshape(STATE_DIM, 1)

    cost = pl.CostEstimate(
        flops=2 * STATE_DIM * A_PAD,
        transcendentals=0,
        bytes_accessed=4 * (STATE_DIM + STATE_DIM * A_PAD + A_PAD),
    )
    logits = pl.pallas_call(
        _policy_single_kernel,
        out_shape=jax.ShapeDtypeStruct((1, A_PAD), jnp.float32),
        in_specs=[
            pl.BlockSpec(memory_space=pltpu.MemorySpace.VMEM),
            pl.BlockSpec(memory_space=pltpu.MemorySpace.VMEM),
        ],
        out_specs=pl.BlockSpec(memory_space=pltpu.MemorySpace.VMEM),
        cost_estimate=cost,
    )(state_col, W)

    logits = logits[0, :NUM_ACTIONS]
    action = jnp.argmax(logits)          # 5-way argmax is free in the wrapper
    return action, logits


def mdp_policy_batch(Q_batch, Y_batch, W, tb=128):
    """Batched policy evaluation: (B, NUM_QUEUES) x2 -> (B,) actions, (B, A) logits."""
    B = Q_batch.shape[0]
    states = jnp.concatenate([Q_batch, Y_batch], axis=-1).astype(jnp.float32)  # (B, S)
    Bp = ((B + tb - 1) // tb) * tb
    if Bp != B:
        states = jnp.pad(states, ((0, Bp - B), (0, 0)))

    cost = pl.CostEstimate(
        flops=2 * Bp * STATE_DIM * A_PAD,
        transcendentals=0,
        bytes_accessed=4 * (Bp * STATE_DIM + STATE_DIM * A_PAD + Bp * A_PAD),
    )
    logits = pl.pallas_call(
        _policy_batch_kernel,
        out_shape=jax.ShapeDtypeStruct((Bp, A_PAD), jnp.float32),
        grid=(Bp // tb,),
        in_specs=[
            pl.BlockSpec((tb, STATE_DIM), lambda i: (i, 0)),
            pl.BlockSpec((STATE_DIM, A_PAD), lambda i: (0, 0)),
        ],
        out_specs=pl.BlockSpec((tb, A_PAD), lambda i: (i, 0)),
        compiler_params=pltpu.CompilerParams(dimension_semantics=("parallel",)),
        cost_estimate=cost,
    )(states, W)

    logits = logits[:B, :NUM_ACTIONS]
    actions = jnp.argmax(logits, axis=-1)
    return actions, logits


def make_policy_params(key):
    """Deterministic synthetic tabular-linear policy weights (S, A_PAD)."""
    return jax.random.normal(key, (STATE_DIM, A_PAD), dtype=jnp.float32)


# ----------------------------------------------------------------------------
# Demo / self-check
# ----------------------------------------------------------------------------
if __name__ == "__main__":
    key = jax.random.PRNGKey(0)
    kq, ky, kw, kqb, kyb = jax.random.split(key, 5)

    W = make_policy_params(kw)
    W_real = W[:, :NUM_ACTIONS]

    # --- single decision (matches MDP_module.forward semantics) ---
    Q = jax.random.randint(kq, (NUM_QUEUES,), 0, 10).astype(jnp.float32)
    Y = jax.random.randint(ky, (NUM_QUEUES,), 0, 2).astype(jnp.float32)

    action, logits = mdp_policy(Q, Y, W)
    jax.block_until_ready(action)
    jax.block_until_ready(logits)

    state_ref = jnp.concatenate([Q, Y]).astype(jnp.float32)
    ref_logits = state_ref @ W_real
    ref_action = jnp.argmax(ref_logits)
    assert int(action) == int(ref_action), (int(action), int(ref_action))
    assert jnp.allclose(logits, ref_logits, atol=1e-4), (logits, ref_logits)

    # --- batched decisions (amortizes launch overhead; parallel over TCs) ---
    B = 256
    Q_batch = jax.random.randint(kqb, (B, NUM_QUEUES), 0, 10).astype(jnp.float32)
    Y_batch = jax.random.randint(kyb, (B, NUM_QUEUES), 0, 2).astype(jnp.float32)

    actions_b, logits_b = mdp_policy_batch(Q_batch, Y_batch, W, tb=128)
    jax.block_until_ready(actions_b)
    jax.block_until_ready(logits_b)

    states_ref = jnp.concatenate([Q_batch, Y_batch], axis=-1).astype(jnp.float32)
    ref_logits_b = states_ref @ W_real
    ref_actions_b = jnp.argmax(ref_logits_b, axis=-1)
    assert jnp.allclose(logits_b, ref_logits_b, atol=1e-4)
    assert bool(jnp.all(actions_b == ref_actions_b))

    print("KERNEL_OK")
</pallas_src>

<mosaic_0001>
module attributes {stable_mosaic.version = 11 : i64} {
  func.func @_policy_single_kernel(%arg0: memref<8x1xf32, #tpu.memory_space<vmem>>, %arg1: memref<8x128xf32, #tpu.memory_space<vmem>>, %arg2: memref<1x128xf32, #tpu.memory_space<vmem>>) attributes {dimension_semantics = [], scalar_prefetch = 0 : i64, scratch_operands = 0 : i64, tpu.core_type = #tpu.core_type<tc>} {
    %c0 = arith.constant 0 : index
    %c0_0 = arith.constant 0 : index
    %0 = vector.load %arg1[%c0, %c0_0] : memref<8x128xf32, #tpu.memory_space<vmem>>, vector<8x128xf32>
    %c0_1 = arith.constant 0 : index
    %c0_2 = arith.constant 0 : index
    %1 = vector.load %arg0[%c0_1, %c0_2] : memref<8x1xf32, #tpu.memory_space<vmem>>, vector<8x1xf32>
    %2 = vector.broadcast %1 : vector<8x1xf32> to vector<8x128xf32>
    %3 = arith.mulf %0, %2 : vector<8x128xf32>
    %cst = arith.constant dense<0.000000e+00> : vector<128xf32>
    %4 = vector.multi_reduction <add>, %3, %cst [0] : vector<8x128xf32> to vector<128xf32>
    %5 = vector.shape_cast %4 : vector<128xf32> to vector<1x128xf32>
    %6 = tpu.iota {dimensions = array<i32: 1>} : vector<1x128xi32>
    %c5_i32 = arith.constant 5 : i32
    %7 = vector.broadcast %c5_i32 : i32 to vector<1x128xi32>
    %8 = arith.cmpi slt, %6, %7 : vector<1x128xi32>
    %cst_3 = arith.constant 0xFF800000 : f32
    %9 = vector.broadcast %cst_3 : f32 to vector<1x128xf32>
    %10 = arith.select %8, %5, %9 : vector<1x128xi1>, vector<1x128xf32>
    %c0_4 = arith.constant 0 : index
    %c0_5 = arith.constant 0 : index
    %11 = vector.load %arg2[%c0_4, %c0_5] : memref<1x128xf32, #tpu.memory_space<vmem>>, vector<1x128xf32>
    tpu.vector_store %arg2[%c0_4, %c0_5], %10 {strides = array<i32>} : memref<1x128xf32, #tpu.memory_space<vmem>>, vector<1x128xf32>,
    return
  }
}

</mosaic_0001>

<llo_original>
// kernel: tpu_custom_call.1
$region0: #{tpu_custom_call.1}
  #allocation0 [shape = 'u32[]', space=smem, size = 0x4, offset = 0x4, fixed_abs, tag = 'smem constant byte address 0x4 - core index']
  #allocation1 [shape = 'u32[144,128]{1,0:T(1,128)}', space=vmem, size = 0x12000, scoped, tag = 'internal scratch']
  %s0 = inlined_call_operand.vmem [shape: f32[8,1], index: 0, kind: input, shape index: {}]
  %s1 = inlined_call_operand.vmem [shape: f32[8,128], index: 1, kind: input, shape index: {}]
  %s2 = inlined_call_operand.hbm [shape: f32[1,128], index: 2, kind: output, shape index: {}]
  %s3 = sld [smem:[#allocation0]]
  $region18: #{tpu_custom_call.1} parent=0
    _
  %s5 = ssub.s32 1, %s3
  %s6 = scalar_select 0, %s5, %s3
  $region1: #{tpu_custom_call.1} parent=0
    #allocation2 [shape = 'u8[512]{0}', space=vmem, size = 0x400, scoped, tag = 'output window, operand 0, single buffered']
    #allocation3 [shape = 's32[1]{0}', space=sflag, size = 0x4, scoped, tag = 'scoped memory for tpu_custom_call.1']
    %7 = vsyncpa [#allocation3], 0
    // Predicated region
    $region2: #{tpu_custom_call.1} parent=1 // pred_check
      _
    $region3: #{tpu_custom_call.1} parent=1 // pred_check_branch
      %9 = sbr.rel (0) target = $region5
    $region4: #{tpu_custom_call.1} parent=1 // pred_region
      _
    $region5: #{tpu_custom_call.1} parent=1 // pred_fallthru
      _
    // Predicated region
    $region6: #{tpu_custom_call.1} parent=1 // pred_check
      _
    $region7: #{tpu_custom_call.1} parent=1 // pred_check_branch
      %11 = sbr.rel (0) target = $region9
    $region8: #{tpu_custom_call.1} parent=1 // pred_region
      _
    $region9: #{tpu_custom_call.1} parent=1 // pred_fallthru
      _
    %v12 = vld [vmem:[%s1] sm:$0xff]
    %v13 = vld [vmem:[%s0] sm:$0xff]
    %15 = vset.pattern.permute.xlu0 0
    %16 = vperm.xlu0 %15, %v13
    %v17 = vpop.permute.xlu0 %16
    %v19 = vmul.f32 %v12, %v17
    %v20 = vrot.slane %v19, 4
    %v21 = vadd.f32 %v19, %v20
    %v22 = vrot.slane %v21, 2
    %v23 = vadd.f32 %v21, %v22
    %v24 = vrot.slane %v23, 1
    %v25 = vadd.f32 %v23, %v24
    %v26 = vlaneseq
    %v27 = vand.u32 %v26, 127
    %vm28 = vcmp.lt.s32.totalorder %v27, 5
    %v29 = vsel %vm28, %v25, -inf
    %30 = vst [vmem:[#allocation2] sm:$0x1] %v29
    // Predicated region
    $region10: #{tpu_custom_call.1} parent=1 // pred_check
      _
    $region11: #{tpu_custom_call.1} parent=1 // pred_check_branch
      %32 = sbr.rel (0) target = $region13
    $region12: #{tpu_custom_call.1} parent=1 // pred_region
      %s34 = ssub.s32 16, 16
      %35 = vsyncadd [#allocation3], %s34
      %s37 = sshll.u32 [#allocation2], 4
      %s38 = int_to_ptr.vmem [resolvable:$true] %s37
      %40 = dma.vmem_to_hbm [thread:$0]  %s38, 16, %s2, [#allocation3]
    $region13: #{tpu_custom_call.1} parent=1 // pred_fallthru
      _
    // Predicated region
    $region14: #{tpu_custom_call.1} parent=1 // pred_check
      _
    $region15: #{tpu_custom_call.1} parent=1 // pred_check_branch
      %42 = sbr.rel (0) target = $region17
    $region16: #{tpu_custom_call.1} parent=1 // pred_region
      %43 = dma.done [#allocation3], 16
    $region17: #{tpu_custom_call.1} parent=1 // pred_fallthru
      _
    %44 = vsyncpa [#allocation3], 1

</llo_original>
